<compile_context>
chip_gen: v7x
topology: tpu7x:2x2x1
jax: 0.10.0
libtpu: 0.0.40
codegen_flags: <defaults>
</compile_context>

<pallas_src>
import functools

import jax
import jax.numpy as jnp
from jax.experimental import pallas as pl
from jax.experimental.pallas import tpu as pltpu


def linear_kernel(x_ref, w_ref, b_ref, o_ref):
    # Single MXU dot per M-tile, f32 accumulate, bias added in the epilogue.
    o_ref[...] = (
        jnp.dot(x_ref[...], w_ref[...], preferred_element_type=jnp.float32)
        + b_ref[...]
    ).astype(o_ref.dtype)


def _choose_tm(m, tm_max=512):
    """Pick an M-tile: 8-aligned, divides M, >=2 tiles when possible."""
    if m <= tm_max:
        half = m // 2
        if m % 2 == 0 and half > 0 and half % 8 == 0:
            return half          # 2 parallel tiles (v7x megacore)
        return m                 # single full-dim tile (always layout-legal)
    for tm in (512, 256, 128, 64, 32, 16, 8):
        if tm <= tm_max and m % tm == 0:
            return tm
    return m                     # fallback: one big tile, no padding needed


@functools.partial(jax.jit, static_argnames=("tm_max",))
def logistic_regression(x, w, b, *, tm_max=512):
    """y = x @ w + b with x:(M,K), w:(K,N), b:(N,)."""
    m, kdim = x.shape
    kdim2, n = w.shape
    assert kdim == kdim2, "x / w inner dims mismatch"

    x = x.astype(jnp.float32)
    w = w.astype(jnp.float32)
    b2 = b.reshape(1, -1).astype(jnp.float32)

    tm = _choose_tm(m, tm_max)
    grid = (m // tm,)

    cost = pl.CostEstimate(
        flops=2 * m * kdim * n,
        transcendentals=0,
        bytes_accessed=4 * (m * kdim + kdim * n + n + m * n),
    )

    out = pl.pallas_call(
        linear_kernel,
        out_shape=jax.ShapeDtypeStruct((m, n), jnp.float32),
        grid_spec=pltpu.PrefetchScalarGridSpec(
            num_scalar_prefetch=0,
            grid=grid,
            in_specs=[
                pl.BlockSpec((tm, kdim), lambda i: (i, 0)),   # x M-tile
                pl.BlockSpec((kdim, n), lambda i: (0, 0)),    # w, grid-invariant
                pl.BlockSpec((1, n), lambda i: (0, 0)),       # bias, grid-invariant
            ],
            out_specs=pl.BlockSpec((tm, n), lambda i: (i, 0)),
        ),
        compiler_params=pltpu.CompilerParams(
            dimension_semantics=("parallel",)),
        cost_estimate=cost,
    )(x, w, b2)

    return out


if __name__ == "__main__":
    # Shapes consistent with LogisticRegression(num_dim, num_class):
    # batch=64 node embeddings of width 256, 16 classes.
    BATCH, NUM_DIM, NUM_CLASS = 64, 256, 16

    key = jax.random.PRNGKey(0)
    kx, kw, kb = jax.random.split(key, 3)

    x = jax.random.normal(kx, (BATCH, NUM_DIM), dtype=jnp.float32)
    # nn.Linear(num_dim, num_class) params, stored pre-transposed as (K, N).
    w = jax.random.normal(kw, (NUM_DIM, NUM_CLASS), dtype=jnp.float32) / (NUM_DIM ** 0.5)
    b = jax.random.normal(kb, (NUM_CLASS,), dtype=jnp.float32) * 0.01

    out = logistic_regression(x, w, b)
    out = jax.block_until_ready(out)

    ref = x @ w + b[None, :]
    assert out.shape == (BATCH, NUM_CLASS)
    assert jnp.allclose(out, ref, atol=1e-4, rtol=1e-4), "mismatch vs reference"
    # TODO(synk): the DGL graph argument `g` (and *args) are unused by
    # LogisticRegression.forward, so nothing is emitted for them.
    print("KERNEL_OK")
</pallas_src>

<mosaic_0001>
module attributes {stable_mosaic.version = 11 : i64} {
  func.func @linear_kernel(%arg0: i32, %arg1: memref<32x256xf32, #tpu.memory_space<vmem>>, %arg2: memref<256x16xf32, #tpu.memory_space<vmem>>, %arg3: memref<1x16xf32, #tpu.memory_space<vmem>>, %arg4: memref<32x16xf32, #tpu.memory_space<vmem>>) attributes {dimension_semantics = [#tpu.dimension_semantics<parallel>], iteration_bounds = array<i64: 2>, scalar_prefetch = 0 : i64, scratch_operands = 0 : i64, tpu.core_type = #tpu.core_type<tc>, window_params = [{transform_indices = @transform_0, window_bounds = array<i64: 32, 256>}, {pipeline_mode = #tpu.pipeline_mode<synchronous>, transform_indices = @transform_1, window_bounds = array<i64: 256, 16>}, {pipeline_mode = #tpu.pipeline_mode<synchronous>, transform_indices = @transform_2, window_bounds = array<i64: 1, 16>}, {transform_indices = @transform_3, window_bounds = array<i64: 32, 16>}]} {
    %c0 = arith.constant 0 : index
    %c0_0 = arith.constant 0 : index
    %0 = vector.load %arg1[%c0, %c0_0] : memref<32x256xf32, #tpu.memory_space<vmem>>, vector<32x256xf32>
    %c0_1 = arith.constant 0 : index
    %c0_2 = arith.constant 0 : index
    %1 = vector.load %arg2[%c0_1, %c0_2] : memref<256x16xf32, #tpu.memory_space<vmem>>, vector<256x16xf32>
    %cst = arith.constant dense<0.000000e+00> : vector<32x16xf32>
    %2 = tpu.matmul %0, %1, %cst {dimension_numbers = #tpu.dot_dimension_numbers<[1], [0], [0], [1], [0, 0, 1, 1], [], []>} : vector<32x256xf32>, vector<256x16xf32>, vector<32x16xf32> -> vector<32x16xf32>
    %c0_3 = arith.constant 0 : index
    %c0_4 = arith.constant 0 : index
    %3 = vector.load %arg3[%c0_3, %c0_4] : memref<1x16xf32, #tpu.memory_space<vmem>>, vector<1x16xf32>
    %4 = vector.broadcast %3 : vector<1x16xf32> to vector<32x16xf32>
    %5 = arith.addf %2, %4 : vector<32x16xf32>
    %c0_5 = arith.constant 0 : index
    %c0_6 = arith.constant 0 : index
    %6 = vector.load %arg4[%c0_5, %c0_6] : memref<32x16xf32, #tpu.memory_space<vmem>>, vector<32x16xf32>
    tpu.vector_store %arg4[%c0_5, %c0_6], %5 {strides = array<i32>} : memref<32x16xf32, #tpu.memory_space<vmem>>, vector<32x16xf32>,
    return
  }
  func.func @transform_0(%arg0: i32) -> (i32, i32) {
    %c0_i32 = arith.constant 0 : i32
    %c0_i32_0 = arith.constant 0 : i32
    return %arg0, %c0_i32 : i32, i32
  }
  func.func @transform_1(%arg0: i32) -> (i32, i32) {
    %c0_i32 = arith.constant 0 : i32
    %c0_i32_0 = arith.constant 0 : i32
    %c0_i32_1 = arith.constant 0 : i32
    return %c0_i32, %c0_i32_0 : i32, i32
  }
  func.func @transform_2(%arg0: i32) -> (i32, i32) {
    %c0_i32 = arith.constant 0 : i32
    %c0_i32_0 = arith.constant 0 : i32
    %c0_i32_1 = arith.constant 0 : i32
    return %c0_i32, %c0_i32_0 : i32, i32
  }
  func.func @transform_3(%arg0: i32) -> (i32, i32) {
    %c0_i32 = arith.constant 0 : i32
    %c0_i32_0 = arith.constant 0 : i32
    return %arg0, %c0_i32 : i32, i32
  }
}

</mosaic_0001>

<llo_original>
// kernel: logistic_regression.1
$region0: #{logistic_regression.1}
  #allocation0 [shape = 'u32[]', space=smem, size = 0x4, offset = 0x4, fixed_abs, tag = 'smem constant byte address 0x4 - core index']
  #allocation1 [shape = 'u32[144,128]{1,0:T(1,128)}', space=vmem, size = 0x12000, scoped, tag = 'internal scratch']
  %s0 = inlined_call_operand.vmem [shape: f32[64,256], index: 0, kind: input, shape index: {}]
  %s1 = inlined_call_operand.vmem [shape: f32[256,16], index: 1, kind: input, shape index: {}]
  %s2 = inlined_call_operand.vmem [shape: f32[1,16], index: 2, kind: input, shape index: {}]
  %s3 = inlined_call_operand.vmem [shape: f32[64,16], index: 3, kind: output, shape index: {}]
  %s4 = sld [smem:[#allocation0]]
  $region45: #{logistic_regression.1} parent=0
    _
  %s6 = ssub.s32 1, %s4
  %s7 = scalar_select 0, %s6, %s4
  loop: start=0, step=1, limit=4
  $region2: #{logistic_regression.1} parent=0 // loop_pre_header
    _
  $region3: #{logistic_regression.1} parent=0 // loop_header
    %s9 = sphi 0, %s13
    %p10 = scmp.ge.s32.totalorder %s9, 4
    %s19 = sphi 0, %s21
    %s22 = sphi 0, %s19
    %s23 = sphi 0, %s22
    %s39 = sphi 0, %s23
    %s43 = sphi 0, %s43
    %s45 = sphi 0, %s43
    %s46 = sphi 0, %s45
    %s60 = sphi 0, %s46
    %s64 = sphi 0, %s64
    %s66 = sphi 0, %s64
    %s67 = sphi 0, %s66
    %s81 = sphi 0, %s67
    %s87 = sphi 0, %s89
    %s90 = sphi 0, %s87
    %s91 = sphi 0, %s90
    %s107 = sphi 0, %s91
  $region4: #{logistic_regression.1} parent=0 // loop_header_branch
    %12 = sbr.rel (%p10) target = $region8
  $region5: #{logistic_regression.1} parent=0 // loop_body
    %s14 = ssub.s32 %s9, 1
    %s15 = ssub.s32 %s9, 2
    %s16 = sadd.s32 %s9, 1
    %s17 = ssub.s32 %s9, %s16
    %p18 = scmp.eq.s32.totalorder %s17, 0
    %s20 = sadd.s32 %s19, 1
    %s21 = scalar_select %p18, %s19, %s20
    %p24 = pneg %p18
    %p25 = scmp.eq.s32.totalorder %s9, 1
    %p26 = por %p24, %p25
    %p27 = scmp.ne.s32.totalorder %s19, %s22
    %p28 = scmp.eq.s32.totalorder %s9, 0
    %p29 = por %p27, %p28
    %p30 = scmp.ne.s32.totalorder %s19, %s22
    %p31 = scmp.eq.s32.totalorder %s14, 1
    %p32 = por %p30, %p31
    %p33 = scmp.ne.s32.totalorder %s22, %s23
    %p34 = scmp.eq.s32.totalorder %s14, 0
    %p35 = por %p33, %p34
    %p36 = scmp.ne.s32.totalorder %s22, %s23
    %p37 = scmp.eq.s32.totalorder %s15, 1
    %p38 = por %p36, %p37
    %p40 = scmp.ne.s32.totalorder %s23, %s39
    %p41 = scmp.eq.s32.totalorder %s15, 0
    %p42 = por %p40, %p41
    %s44 = sadd.s32 %s43, 1
    %p47 = scmp.eq.s32.totalorder %s9, 1
    %p48 = scmp.ne.s32.totalorder %s43, %s45
    %p49 = scmp.eq.s32.totalorder %s9, 0
    %p50 = por %p48, %p49
    %p51 = scmp.ne.s32.totalorder %s43, %s45
    %p52 = scmp.eq.s32.totalorder %s14, 1
    %p53 = por %p51, %p52
    %p54 = scmp.ne.s32.totalorder %s45, %s46
    %p55 = scmp.eq.s32.totalorder %s14, 0
    %p56 = por %p54, %p55
    %p57 = scmp.ne.s32.totalorder %s45, %s46
    %p58 = scmp.eq.s32.totalorder %s15, 1
    %p59 = por %p57, %p58
    %p61 = scmp.ne.s32.totalorder %s46, %s60
    %p62 = scmp.eq.s32.totalorder %s15, 0
    %p63 = por %p61, %p62
    %s65 = sadd.s32 %s64, 1
    %p68 = scmp.eq.s32.totalorder %s9, 1
    %p69 = scmp.ne.s32.totalorder %s64, %s66
    %p70 = scmp.eq.s32.totalorder %s9, 0
    %p71 = por %p69, %p70
    %p72 = scmp.ne.s32.totalorder %s64, %s66
    %p73 = scmp.eq.s32.totalorder %s14, 1
    %p74 = por %p72, %p73
    %p75 = scmp.ne.s32.totalorder %s66, %s67
    %p76 = scmp.eq.s32.totalorder %s14, 0
    %p77 = por %p75, %p76
    %p78 = scmp.ne.s32.totalorder %s66, %s67
    %p79 = scmp.eq.s32.totalorder %s15, 1
    %p80 = por %p78, %p79
    %p82 = scmp.ne.s32.totalorder %s67, %s81
    %p83 = scmp.eq.s32.totalorder %s15, 0
    %p84 = por %p82, %p83
    %s85 = ssub.s32 %s9, %s16
    %p86 = scmp.eq.s32.totalorder %s85, 0
    %s88 = sadd.s32 %s87, 1
    %s89 = scalar_select %p86, %s87, %s88
    %p92 = pneg %p86
    %p93 = scmp.eq.s32.totalorder %s9, 1
    %p94 = por %p92, %p93
    %p95 = scmp.ne.s32.totalorder %s87, %s90
    %p96 = scmp.eq.s32.totalorder %s9, 0
    %p97 = por %p95, %p96
    %p98 = scmp.ne.s32.totalorder %s87, %s90
    %p99 = scmp.eq.s32.totalorder %s14, 1
    %p100 = por %p98, %p99
    %p101 = scmp.ne.s32.totalorder %s90, %s91
    %p102 = scmp.eq.s32.totalorder %s14, 0
    %p103 = por %p101, %p102
    %p104 = scmp.ne.s32.totalorder %s90, %s91
    %p105 = scmp.eq.s32.totalorder %s15, 1
    %p106 = por %p104, %p105
    %p108 = scmp.ne.s32.totalorder %s91, %s107
    %p109 = scmp.eq.s32.totalorder %s15, 0
    %p110 = por %p108, %p109
    %p111 = scmp.le.s32.totalorder 1, %s9
    %p112 = scmp.lt.s32.totalorder %s9, 3
    %p113 = pnand %p111, %p112
    %p114 = pneg %p113
    // Predicated region
    $region9: #{logistic_regression.1} parent=5 // pred_check
      _
    $region10: #{logistic_regression.1} parent=5 // pred_check_branch
      %116 = sbr.rel (%p113) target = $region12
    $region11: #{logistic_regression.1} parent=5 // pred_region
      %s117 = ssub.s32 %s9, 1
      // Predicated region
      $region13: #{logistic_regression.1} parent=11 // pred_check
        %p118 = pneg %p56
      $region14: #{logistic_regression.1} parent=11 // pred_check_branch
        %120 = sbr.rel (%p118) target = $region16
      $region15: #{logistic_regression.1} parent=11 // pred_region
        _
      $region16: #{logistic_regression.1} parent=11 // pred_fallthru
        _
      // Predicated region
      $region17: #{logistic_regression.1} parent=11 // pred_check
        %p121 = pneg %p77
      $region18: #{logistic_regression.1} parent=11 // pred_check_branch
        %123 = sbr.rel (%p121) target = $region20
      $region19: #{logistic_regression.1} parent=11 // pred_region
        _
      $region20: #{logistic_regression.1} parent=11 // pred_fallthru
        _
    $region12: #{logistic_regression.1} parent=5 // pred_fallthru
      _
    %p124 = scmp.lt.s32.totalorder %s9, 2
    // Predicated region
    $region21: #{logistic_regression.1} parent=5 // pred_check
      %p125 = pneg %p124
    $region22: #{logistic_regression.1} parent=5 // pred_check_branch
      %127 = sbr.rel (%p125) target = $region24
    $region23: #{logistic_regression.1} parent=5 // pred_region
      // Predicated region
      $region25: #{logistic_regression.1} parent=23 // pred_check
        %p128 = pneg %p29
      $region26: #{logistic_regression.1} parent=23 // pred_check_branch
        %130 = sbr.rel (%p128) target = $region28
      $region27: #{logistic_regression.1} parent=23 // pred_region
        %s131 = smul.u32 4, %s9
        %p132 = scmp.lt.s32.totalorder %s131, 7
        %s133 = scalar_select %p132, %s131, 7
        %s134 = smul.addr %s133, 2
        %s135 = smul.addr %s134, 8
        %s136 = scalar_lea.vmem %s0, %s135
        %s137 = smul.u32 4, %s9
      $region28: #{logistic_regression.1} parent=23 // pred_fallthru
        _
    $region24: #{logistic_regression.1} parent=5 // pred_fallthru
      _
    %p138 = scmp.le.s32.totalorder 1, %s9
    %p139 = scmp.lt.s32.totalorder %s9, 3
    %p140 = pnand %p138, %p139
    %p141 = pneg %p140
    // Predicated region
    $region29: #{logistic_regression.1} parent=5 // pred_check
      _
    $region30: #{logistic_regression.1} parent=5 // pred_check_branch
      %143 = sbr.rel (%p140) target = $region32
    $region31: #{logistic_regression.1} parent=5 // pred_region
      %s144 = ssub.s32 %s9, 1
      %s145 = smul.u32 4, %s14
      %p146 = scmp.lt.s32.totalorder %s145, 7
      %s147 = scalar_select %p146, %s145, 7
      %s148 = smul.addr %s147, 2
      %s149 = smul.addr %s148, 8
      %s150 = scalar_lea.vmem %s0, %s149
      %p151 = pneg %p35
      %p152 = pneg %p32
      %p153 = pneg %p56
      %p154 = pneg %p53
      %p155 = pneg %p77
      %p156 = pneg %p74
      %p157 = pneg %p103
      %p158 = pneg %p100
      %s159 = smul.u32 4, %s14
      %p160 = scmp.lt.s32.totalorder %s159, 7
      %s161 = scalar_select %p160, %s159, 7
      %s162 = smul.addr %s161, 8
      %s163 = scalar_lea.vmem %s3, %s162
      %s164 = smul.u32 4, %s14
      %p165 = scmp.lt.s32.totalorder %s164, 7
      %s166 = scalar_select %p165, %s164, 7
      %s167 = smul.addr %s166, 2
      %s168 = smul.addr %s167, 8
      %s169 = scalar_lea.vmem %s0, %s168
      %s170 = smul.u32 4, %s14
      %s171 = smul.u32 4, %s14
      %p172 = scmp.lt.s32.totalorder %s171, 7
      %s173 = scalar_select %p172, %s171, 7
      %s174 = smul.addr %s173, 8
      %s175 = scalar_lea.vmem %s3, %s174
      %s176 = smul.u32 4, %s14
      %v177 = vld [vmem:[%s169] sm:$0xff]
      %v178 = vld [vmem:[%s169 + $0x8] sm:$0xff]
      %v179 = vld [vmem:[%s169 + $0x10] sm:$0xff]
      %v180 = vld [vmem:[%s169 + $0x18] sm:$0xff]
      %v181 = vld [vmem:[%s169 + $0x20] sm:$0xff]
      %v182 = vld [vmem:[%s169 + $0x28] sm:$0xff]
      %v183 = vld [vmem:[%s169 + $0x30] sm:$0xff]
      %v184 = vld [vmem:[%s169 + $0x38] sm:$0xff]
      %v185 = vld [vmem:[%s1] sm:$0xff]
      %v186 = vld [vmem:[%s1 + $0x8] sm:$0xff]
      %v187 = vld [vmem:[%s1 + $0x10] sm:$0xff]
      %v188 = vld [vmem:[%s1 + $0x18] sm:$0xff]
      %v189 = vld [vmem:[%s1 + $0x20] sm:$0xff]
      %v190 = vld [vmem:[%s1 + $0x28] sm:$0xff]
      %v191 = vld [vmem:[%s1 + $0x30] sm:$0xff]
      %v192 = vld [vmem:[%s1 + $0x38] sm:$0xff]
      %v193 = vld [vmem:[%s1 + $0x40] sm:$0xff]
      %v194 = vld [vmem:[%s1 + $0x48] sm:$0xff]
      %v195 = vld [vmem:[%s1 + $0x50] sm:$0xff]
      %v196 = vld [vmem:[%s1 + $0x58] sm:$0xff]
      %v197 = vld [vmem:[%s1 + $0x60] sm:$0xff]
      %v198 = vld [vmem:[%s1 + $0x68] sm:$0xff]
      %v199 = vld [vmem:[%s1 + $0x70] sm:$0xff]
      %v200 = vld [vmem:[%s1 + $0x78] sm:$0xff]
      %v201 = vld [vmem:[%s1 + $0x80] sm:$0xff]
      %v202 = vld [vmem:[%s1 + $0x88] sm:$0xff]
      %v203 = vld [vmem:[%s1 + $0x90] sm:$0xff]
      %v204 = vld [vmem:[%s1 + $0x98] sm:$0xff]
      %v205 = vld [vmem:[%s1 + $0xa0] sm:$0xff]
      %v206 = vld [vmem:[%s1 + $0xa8] sm:$0xff]
      %v207 = vld [vmem:[%s1 + $0xb0] sm:$0xff]
      %v208 = vld [vmem:[%s1 + $0xb8] sm:$0xff]
      %v209 = vld [vmem:[%s1 + $0xc0] sm:$0xff]
      %v210 = vld [vmem:[%s1 + $0xc8] sm:$0xff]
      %v211 = vld [vmem:[%s1 + $0xd0] sm:$0xff]
      %v212 = vld [vmem:[%s1 + $0xd8] sm:$0xff]
      %v213 = vld [vmem:[%s1 + $0xe0] sm:$0xff]
      %v214 = vld [vmem:[%s1 + $0xe8] sm:$0xff]
      %v215 = vld [vmem:[%s1 + $0xf0] sm:$0xff]
      %v216 = vld [vmem:[%s1 + $0xf8] sm:$0xff]
      %v217 = vld [vmem:[%s2] sm:$0x1]
      %v219 = vlaneseq
      %v220 = vshrl.u32 %v219, 7
      %v221 = vsub.s32 0, %v220
      %v222 = vrot.slane %v217, %v221
      %224 = vmatprep.subr.mxu0 0.0
      %225 = vmatpush1.msra.mxu0 %v185
      %226 = vmatprep.subr.mxu0 0.0
      %227 = vmatpush1.msra.mxu0 %v186
      %228 = vmatprep.subr.mxu0 0.0
      %229 = vmatpush1.msra.mxu0 %v187
      %230 = vmatprep.subr.mxu0 0.0
      %231 = vmatpush1.msra.mxu0 %v188
      %232 = vmatprep.subr.mxu0 0.0
      %233 = vmatpush1.msra.mxu0 %v189
      %234 = vmatprep.subr.mxu0 0.0
      %235 = vmatpush1.msra.mxu0 %v190
      %236 = vmatprep.subr.mxu0 0.0
      %237 = vmatpush1.msra.mxu0 %v191
      %238 = vmatprep.subr.mxu0 0.0
      %239 = vmatpush1.msra.mxu0 %v192
      %240 = vmatprep.subr.mxu0 0.0
      %241 = vmatpush1.msra.mxu0 %v193
      %242 = vmatprep.subr.mxu0 0.0
      %243 = vmatpush1.msra.mxu0 %v194
      %244 = vmatprep.subr.mxu0 0.0
      %245 = vmatpush1.msra.mxu0 %v195
      %246 = vmatprep.subr.mxu0 0.0
      %247 = vmatpush1.msra.mxu0 %v196
      %248 = vmatprep.subr.mxu0 0.0
      %249 = vmatpush1.msra.mxu0 %v197
      %250 = vmatprep.subr.mxu0 0.0
      %251 = vmatpush1.msra.mxu0 %v198
      %252 = vmatprep.subr.mxu0 0.0
      %253 = vmatpush1.msra.mxu0 %v199
      %254 = vmatprep.subr.mxu0 0.0
      %255 = vmatpush1.msra.mxu0 %v200
      %256 = vmatprep.subr.mxu0 0.0
      %257 = vmatpush1.msra.mxu0 %v201
      %258 = vmatprep.subr.mxu0 0.0
      %259 = vmatpush1.msra.mxu0 %v202
      %260 = vmatprep.subr.mxu0 0.0
      %261 = vmatpush1.msra.mxu0 %v203
      %262 = vmatprep.subr.mxu0 0.0
      %263 = vmatpush1.msra.mxu0 %v204
      %264 = vmatprep.subr.mxu0 0.0
      %265 = vmatpush1.msra.mxu0 %v205
      %266 = vmatprep.subr.mxu0 0.0
      %267 = vmatpush1.msra.mxu0 %v206
      %268 = vmatprep.subr.mxu0 0.0
      %269 = vmatpush1.msra.mxu0 %v207
      %270 = vmatprep.subr.mxu0 0.0
      %271 = vmatpush1.msra.mxu0 %v208
      %272 = vmatprep.subr.mxu0 0.0
      %273 = vmatpush1.msra.mxu0 %v209
      %274 = vmatprep.subr.mxu0 0.0
      %275 = vmatpush1.msra.mxu0 %v210
      %276 = vmatprep.subr.mxu0 0.0
      %277 = vmatpush1.msra.mxu0 %v211
      %278 = vmatprep.subr.mxu0 0.0
      %279 = vmatpush1.msra.mxu0 %v212
      %280 = vmatprep.subr.mxu0 0.0
      %281 = vmatpush1.msra.mxu0 %v213
      %282 = vmatprep.subr.mxu0 0.0
      %283 = vmatpush1.msra.mxu0 %v214
      %284 = vmatprep.subr.mxu0 0.0
      %285 = vmatpush1.msra.mxu0 %v215
      %286 = vmatprep.subr.mxu0 0.0
      %287 = vmatpush1.msra.mxu0 %v216
      %288 = vmatprep.mubr.f32.mxu0 %v178
      %289 = vmatmul.mubr.f32.gmra.mrb[0].mxu0 %v177
      %v290 = vpop.f32.mrb[0].mxu0
      %v291 = vadd.f32 %v222, %v290
      %v292 = vpop.f32.mrb[0].mxu0
      %293 = vmatprep.mubr.f32.mxu0 %v180
      %294 = vmatmul.mubr.f32.gmra.mrb[0].mxu0 %v179
      %v295 = vpop.f32.mrb[0].mxu0
      %v296 = vadd.f32 %v222, %v295
      %v297 = vpop.f32.mrb[0].mxu0
      %298 = vmatprep.mubr.f32.mxu0 %v182
      %299 = vmatmul.mubr.f32.gmra.mrb[0].mxu0 %v181
      %v300 = vpop.f32.mrb[0].mxu0
      %v301 = vadd.f32 %v222, %v300
      %v302 = vpop.f32.mrb[0].mxu0
      %303 = vmatprep.mubr.f32.mxu0 %v184
      %304 = vmatmul.mubr.f32.gmra.mrb[0].mxu0 %v183
      %v305 = vpop.f32.mrb[0].mxu0
      %v306 = vadd.f32 %v222, %v305
      %v307 = vpop.f32.mrb[0].mxu0
      %308 = vdwg.mxu0
      %vm309 = vcmask 130048
      %310 = vst.msk [vmem:[%s175] sm:$0xff] %vm309, %v291
      %311 = vst.msk [vmem:[%s175 + $0x8] sm:$0xff] %vm309, %v296
      %312 = vst.msk [vmem:[%s175 + $0x10] sm:$0xff] %vm309, %v301
      %313 = vst.msk [vmem:[%s175 + $0x18] sm:$0xff] %vm309, %v306
      %s314 = smul.u32 4, %s14
      %p315 = scmp.lt.s32.totalorder %s314, 7
      %s316 = scalar_select %p315, %s314, 7
      %s317 = smul.addr %s316, 8
      %s318 = scalar_lea.vmem %s3, %s317
      // Predicated region
      $region33: #{logistic_regression.1} parent=31 // pred_check
        %p319 = pneg %p100
      $region34: #{logistic_regression.1} parent=31 // pred_check_branch
        %321 = sbr.rel (%p319) target = $region36
      $region35: #{logistic_regression.1} parent=31 // pred_region
        %s322 = smul.u32 4, %s14
      $region36: #{logistic_regression.1} parent=31 // pred_fallthru
        _
    $region32: #{logistic_regression.1} parent=5 // pred_fallthru
      _
    %p323 = scmp.le.s32.totalorder 2, %s9
    // Predicated region
    $region37: #{logistic_regression.1} parent=5 // pred_check
      %p324 = pneg %p323
    $region38: #{logistic_regression.1} parent=5 // pred_check_branch
      %326 = sbr.rel (%p324) target = $region40
    $region39: #{logistic_regression.1} parent=5 // pred_region
      %s327 = ssub.s32 %s9, 2
      // Predicated region
      $region41: #{logistic_regression.1} parent=39 // pred_check
        %p328 = pneg %p106
      $region42: #{logistic_regression.1} parent=39 // pred_check_branch
        %330 = sbr.rel (%p328) target = $region44
      $region43: #{logistic_regression.1} parent=39 // pred_region
        %s331 = smul.u32 4, %s15
        %p332 = scmp.lt.s32.totalorder %s331, 7
        %s333 = scalar_select %p332, %s331, 7
        %s334 = smul.addr %s333, 8
        %s335 = scalar_lea.vmem %s3, %s334
      $region44: #{logistic_regression.1} parent=39 // pred_fallthru
        _
    $region40: #{logistic_regression.1} parent=5 // pred_fallthru
      _
  $region6: #{logistic_regression.1} parent=0 // loop_footer
    %s13 = sadd.s32 1, %s9
  $region7: #{logistic_regression.1} parent=0 // loop_footer_branch
    %8 = sbr.rel target = $region3
  $region8: #{logistic_regression.1} parent=0 // loop_exit
    _

</llo_original>
